<compile_context>
chip_gen: v7x
topology: tpu7x:2x2x1
jax: 0.10.0
libtpu: 0.0.40
codegen_flags: <defaults>
</compile_context>

<pallas_src>
import jax
import jax.numpy as jnp
from jax.experimental import pallas as pl
from jax.experimental.pallas import tpu as pltpu

SMOOTH = 1e-6
LANES = 128
MAX_TILE_ROWS = 2048   # (2048, 128) f32 tile = 1 MiB; 2 inputs x 2 buffers = 4 MiB VMEM
NUM_SHARDS = 2         # leading "parallel" grid axis; shards rows across TCs on v7x


def _dice_partial_sums_kernel(p_ref, t_ref, acc_ref):
    """Accumulate per-lane partial sums.

    acc_ref has shape (3, 1, LANES):
      acc[0] = per-lane sum(p * t), acc[1] = per-lane sum(p * p),
      acc[2] = per-lane sum(t).
    The final cross-lane reduce is done once in the wrapper.
    """
    i = pl.program_id(1)  # reduction axis (innermost)

    @pl.when(i == 0)
    def _():
        acc_ref[...] = jnp.zeros_like(acc_ref)

    p = p_ref[...]
    t = t_ref[...]
    if p.dtype != jnp.float32:
        p = p.astype(jnp.float32)
    if t.dtype != jnp.float32:
        t = t.astype(jnp.float32)

    acc_ref[0] += jnp.sum(p * t, axis=0, keepdims=True)
    acc_ref[1] += jnp.sum(p * p, axis=0, keepdims=True)
    acc_ref[2] += jnp.sum(t, axis=0, keepdims=True)


def _partial_sums(p2d, t2d, tile_rows, shards, bps):
    """Run the reduction kernel over a (shards*bps*tile_rows, LANES) slab."""
    acc = pl.pallas_call(
        _dice_partial_sums_kernel,
        out_shape=jax.ShapeDtypeStruct((3 * shards, 1, LANES), jnp.float32),
        grid_spec=pltpu.PrefetchScalarGridSpec(
            num_scalar_prefetch=0,
            grid=(shards, bps),
            in_specs=[
                pl.BlockSpec((tile_rows, LANES), lambda s, i: (s * bps + i, 0)),
                pl.BlockSpec((tile_rows, LANES), lambda s, i: (s * bps + i, 0)),
            ],
            out_specs=pl.BlockSpec((3, 1, LANES), lambda s, i: (s, 0, 0)),
        ),
        compiler_params=pltpu.CompilerParams(
            dimension_semantics=("parallel", "arbitrary"),
            vmem_limit_bytes=32 * 1024 * 1024,
        ),
    )(p2d, t2d)
    # (3*shards, 1, 128) -> (shards, 3, 128); reduce shards + lanes once.
    sums = jnp.sum(acc.reshape(shards, 3, LANES), axis=(0, 2))
    return sums[0], sums[1], sums[2]


def dice_loss(predict, target, smooth=SMOOTH):
    """DiceLoss forward (reduction='all'), matching the PyTorch module."""
    assert predict.shape == target.shape
    n = predict.size

    p_flat = predict.reshape(-1)   # flatten is layout-free (no HBM copy)
    t_flat = target.reshape(-1)

    rows_total = n // LANES
    tile_rows = min(MAX_TILE_ROWS, (rows_total // 8) * 8)  # multiple of 8

    if tile_rows >= 8:
        n_blocks = rows_total // tile_rows
        shards = NUM_SHARDS if n_blocks >= NUM_SHARDS else 1
        bps = n_blocks // shards
        main_rows = shards * bps * tile_rows
        main = main_rows * LANES
        p2d = p_flat[:main].reshape(main_rows, LANES)
        t2d = t_flat[:main].reshape(main_rows, LANES)
        inter, psq, tsum = _partial_sums(p2d, t2d, tile_rows, shards, bps)
    else:
        # Tiny input (< one (8,128) tile): zero-pad it (zeros are neutral).
        pad = 8 * LANES - n
        p2d = jnp.pad(p_flat, (0, pad)).reshape(8, LANES)
        t2d = jnp.pad(t_flat, (0, pad)).reshape(8, LANES)
        inter, psq, tsum = _partial_sums(p2d, t2d, 8, 1, 1)
        main = n

    if main < n:
        # Ragged tail (< one block of elements): plain JAX, negligible traffic.
        p_tail = p_flat[main:]
        t_tail = t_flat[main:]
        if p_tail.dtype != jnp.float32:
            p_tail = p_tail.astype(jnp.float32)
        if t_tail.dtype != jnp.float32:
            t_tail = t_tail.astype(jnp.float32)
        inter = inter + jnp.sum(p_tail * t_tail)
        psq = psq + jnp.sum(p_tail * p_tail)
        tsum = tsum + jnp.sum(t_tail)

    union = psq + tsum
    dice_coef = (2.0 * inter + smooth) / (union + smooth)
    return 1.0 - dice_coef  # mean over a scalar dice is identity


def dice_loss_ref(predict, target, smooth=SMOOTH):
    p = predict.reshape(-1).astype(jnp.float32)
    t = target.reshape(-1).astype(jnp.float32)
    intersection = jnp.sum(p * t)
    union = jnp.sum(p * p) + jnp.sum(t)
    return 1.0 - (2.0 * intersection + smooth) / (union + smooth)


if __name__ == "__main__":
    key = jax.random.PRNGKey(0)
    k1, k2 = jax.random.split(key)
    # NCHW inputs, consistent with the PyTorch module's typical usage.
    predict = jax.nn.sigmoid(jax.random.normal(k1, (2, 4, 16, 16), jnp.float32))
    target = (jax.random.uniform(k2, (2, 4, 16, 16)) > 0.5).astype(jnp.float32)

    loss = dice_loss(predict, target)
    loss = jax.block_until_ready(loss)

    ref = dice_loss_ref(predict, target)
    assert jnp.allclose(loss, ref, rtol=1e-5, atol=1e-6), (loss, ref)
    print("KERNEL_OK")
</pallas_src>

<mosaic_0001>
module attributes {stable_mosaic.version = 11 : i64} {
  func.func @_dice_partial_sums_kernel(%arg0: i32, %arg1: i32, %arg2: memref<16x128xf32, #tpu.memory_space<vmem>>, %arg3: memref<16x128xf32, #tpu.memory_space<vmem>>, %arg4: memref<3x1x128xf32, #tpu.memory_space<vmem>>) attributes {dimension_semantics = [#tpu.dimension_semantics<parallel>, #tpu.dimension_semantics<arbitrary>], iteration_bounds = array<i64: 1, 1>, scalar_prefetch = 0 : i64, scratch_operands = 0 : i64, tpu.core_type = #tpu.core_type<tc>, window_params = [{transform_indices = @transform_0, window_bounds = array<i64: 16, 128>}, {transform_indices = @transform_1, window_bounds = array<i64: 16, 128>}, {transform_indices = @transform_2, window_bounds = array<i64: 3, 1, 128>}]} {
    %c0_i32 = arith.constant 0 : i32
    %0 = arith.cmpi eq, %arg1, %c0_i32 : i32
    %1 = arith.extui %0 : i1 to i32
    %c0_i32_0 = arith.constant 0 : i32
    %2 = arith.cmpi ne, %1, %c0_i32_0 : i32
    scf.if %2 {
      %cst_22 = arith.constant 0.000000e+00 : f32
      %31 = vector.broadcast %cst_22 : f32 to vector<3x1x128xf32>
      %c0_23 = arith.constant 0 : index
      %c0_24 = arith.constant 0 : index
      %c0_25 = arith.constant 0 : index
      %32 = vector.load %arg4[%c0_23, %c0_24, %c0_25] : memref<3x1x128xf32, #tpu.memory_space<vmem>>, vector<3x1x128xf32>
      tpu.vector_store %arg4[%c0_23, %c0_24, %c0_25], %31 {strides = array<i32>} : memref<3x1x128xf32, #tpu.memory_space<vmem>>, vector<3x1x128xf32>,
    } else {
    }
    %c0 = arith.constant 0 : index
    %c0_1 = arith.constant 0 : index
    %3 = vector.load %arg2[%c0, %c0_1] : memref<16x128xf32, #tpu.memory_space<vmem>>, vector<16x128xf32>
    %c0_2 = arith.constant 0 : index
    %c0_3 = arith.constant 0 : index
    %4 = vector.load %arg3[%c0_2, %c0_3] : memref<16x128xf32, #tpu.memory_space<vmem>>, vector<16x128xf32>
    %c0_4 = arith.constant 0 : index
    %c0_5 = arith.constant 0 : index
    %c0_6 = arith.constant 0 : index
    %5 = vector.load %arg4[%c0_4, %c0_5, %c0_6] : memref<3x1x128xf32, #tpu.memory_space<vmem>>, vector<1x1x128xf32>
    %6 = vector.shape_cast %5 : vector<1x1x128xf32> to vector<1x128xf32>
    %7 = arith.mulf %3, %4 : vector<16x128xf32>
    %cst = arith.constant dense<0.000000e+00> : vector<128xf32>
    %8 = vector.multi_reduction <add>, %7, %cst [0] : vector<16x128xf32> to vector<128xf32>
    %9 = vector.shape_cast %8 : vector<128xf32> to vector<1x128xf32>
    %10 = arith.addf %6, %9 : vector<1x128xf32>
    %c0_7 = arith.constant 0 : index
    %c0_8 = arith.constant 0 : index
    %c0_9 = arith.constant 0 : index
    %11 = vector.load %arg4[%c0_7, %c0_8, %c0_9] : memref<3x1x128xf32, #tpu.memory_space<vmem>>, vector<1x1x128xf32>
    %12 = vector.shape_cast %11 : vector<1x1x128xf32> to vector<1x128xf32>
    %13 = vector.shape_cast %10 : vector<1x128xf32> to vector<1x1x128xf32>
    tpu.vector_store %arg4[%c0_7, %c0_8, %c0_9], %13 {strides = array<i32>} : memref<3x1x128xf32, #tpu.memory_space<vmem>>, vector<1x1x128xf32>,
    %c1 = arith.constant 1 : index
    %c0_10 = arith.constant 0 : index
    %c0_11 = arith.constant 0 : index
    %14 = vector.load %arg4[%c1, %c0_10, %c0_11] : memref<3x1x128xf32, #tpu.memory_space<vmem>>, vector<1x1x128xf32>
    %15 = vector.shape_cast %14 : vector<1x1x128xf32> to vector<1x128xf32>
    %16 = arith.mulf %3, %3 : vector<16x128xf32>
    %cst_12 = arith.constant dense<0.000000e+00> : vector<128xf32>
    %17 = vector.multi_reduction <add>, %16, %cst_12 [0] : vector<16x128xf32> to vector<128xf32>
    %18 = vector.shape_cast %17 : vector<128xf32> to vector<1x128xf32>
    %19 = arith.addf %15, %18 : vector<1x128xf32>
    %c1_13 = arith.constant 1 : index
    %c0_14 = arith.constant 0 : index
    %c0_15 = arith.constant 0 : index
    %20 = vector.load %arg4[%c1_13, %c0_14, %c0_15] : memref<3x1x128xf32, #tpu.memory_space<vmem>>, vector<1x1x128xf32>
    %21 = vector.shape_cast %20 : vector<1x1x128xf32> to vector<1x128xf32>
    %22 = vector.shape_cast %19 : vector<1x128xf32> to vector<1x1x128xf32>
    tpu.vector_store %arg4[%c1_13, %c0_14, %c0_15], %22 {strides = array<i32>} : memref<3x1x128xf32, #tpu.memory_space<vmem>>, vector<1x1x128xf32>,
    %c2 = arith.constant 2 : index
    %c0_16 = arith.constant 0 : index
    %c0_17 = arith.constant 0 : index
    %23 = vector.load %arg4[%c2, %c0_16, %c0_17] : memref<3x1x128xf32, #tpu.memory_space<vmem>>, vector<1x1x128xf32>
    %24 = vector.shape_cast %23 : vector<1x1x128xf32> to vector<1x128xf32>
    %cst_18 = arith.constant dense<0.000000e+00> : vector<128xf32>
    %25 = vector.multi_reduction <add>, %4, %cst_18 [0] : vector<16x128xf32> to vector<128xf32>
    %26 = vector.shape_cast %25 : vector<128xf32> to vector<1x128xf32>
    %27 = arith.addf %24, %26 : vector<1x128xf32>
    %c2_19 = arith.constant 2 : index
    %c0_20 = arith.constant 0 : index
    %c0_21 = arith.constant 0 : index
    %28 = vector.load %arg4[%c2_19, %c0_20, %c0_21] : memref<3x1x128xf32, #tpu.memory_space<vmem>>, vector<1x1x128xf32>
    %29 = vector.shape_cast %28 : vector<1x1x128xf32> to vector<1x128xf32>
    %30 = vector.shape_cast %27 : vector<1x128xf32> to vector<1x1x128xf32>
    tpu.vector_store %arg4[%c2_19, %c0_20, %c0_21], %30 {strides = array<i32>} : memref<3x1x128xf32, #tpu.memory_space<vmem>>, vector<1x1x128xf32>,
    return
  }
  func.func @transform_0(%arg0: i32, %arg1: i32) -> (i32, i32) {
    %c1_i32 = arith.constant 1 : i32
    %0 = arith.muli %arg0, %c1_i32 : i32
    %1 = arith.addi %0, %arg1 : i32
    %c0_i32 = arith.constant 0 : i32
    %c0_i32_0 = arith.constant 0 : i32
    return %1, %c0_i32 : i32, i32
  }
  func.func @transform_1(%arg0: i32, %arg1: i32) -> (i32, i32) {
    %c1_i32 = arith.constant 1 : i32
    %0 = arith.muli %arg0, %c1_i32 : i32
    %1 = arith.addi %0, %arg1 : i32
    %c0_i32 = arith.constant 0 : i32
    %c0_i32_0 = arith.constant 0 : i32
    return %1, %c0_i32 : i32, i32
  }
  func.func @transform_2(%arg0: i32, %arg1: i32) -> (i32, i32, i32) {
    %c0_i32 = arith.constant 0 : i32
    %c0_i32_0 = arith.constant 0 : i32
    %c0_i32_1 = arith.constant 0 : i32
    return %arg0, %c0_i32, %c0_i32_0 : i32, i32, i32
  }
}

</mosaic_0001>

<llo_original>
// kernel: tpu_custom_call.1
$region0: #{tpu_custom_call.1}
  #allocation0 [shape = 'u32[]', space=smem, size = 0x4, offset = 0x4, fixed_abs, tag = 'smem constant byte address 0x4 - core index']
  #allocation1 [shape = 'u32[144,128]{1,0:T(1,128)}', space=vmem, size = 0x12000, scoped, tag = 'internal scratch']
  %s0 = inlined_call_operand.hbm [shape: f32[16,128], index: 0, kind: input, shape index: {}]
  %s1 = inlined_call_operand.hbm [shape: f32[16,128], index: 1, kind: input, shape index: {}]
  %s2 = inlined_call_operand.hbm [shape: f32[3,1,128], index: 2, kind: output, shape index: {}]
  %s3 = sld [smem:[#allocation0]]
  $region30: #{tpu_custom_call.1} parent=0
    _
  %s5 = ssub.s32 1, %s3
  %s6 = scalar_select 0, %s5, %s3
  $region1: #{tpu_custom_call.1} parent=0
    #allocation2 [shape = 'u8[8192]{0}', space=vmem, size = 0x2000, scoped, tag = 'input window, operand 0, single buffered']
    #allocation3 [shape = 's32[1]{0}', space=sflag, size = 0x4, scoped, tag = 'scoped memory for tpu_custom_call.1']
    #allocation4 [shape = 's32[1]{0}', space=sflag, size = 0x4, scoped, tag = 'scoped memory for tpu_custom_call.1']
    #allocation5 [shape = 'u8[8192]{0}', space=vmem, size = 0x2000, scoped, tag = 'input window, operand 1, single buffered']
    #allocation6 [shape = 's32[1]{0}', space=sflag, size = 0x4, scoped, tag = 'scoped memory for tpu_custom_call.1']
    #allocation7 [shape = 'u8[1536]{0}', space=vmem, size = 0x800, scoped, tag = 'output window, operand 0, single buffered']
    %7 = vsyncpa [#allocation3], 0
    %8 = vsyncpa [#allocation6], 0
    %9 = vsyncpa [#allocation4], 0
    // Predicated region
    $region2: #{tpu_custom_call.1} parent=1 // pred_check
      _
    $region3: #{tpu_custom_call.1} parent=1 // pred_check_branch
      %11 = sbr.rel (0) target = $region5
    $region4: #{tpu_custom_call.1} parent=1 // pred_region
      %s12 = sadd.s32 0, 0
      %s13 = smul.u32 2, %s12
      %s15 = ssub.s32 256, 256
      %16 = vsyncadd [#allocation3], %s15
      %s17 = smul.addr %s13, 128
      %s18 = scalar_lea.hbm %s0, %s17
      %s19 = sshll.u32 [#allocation2], 4
      %s20 = int_to_ptr.vmem [resolvable:$true] %s19
      %25 = dma.hbm_to_vmem [thread:$0]  %s18, 256, %s20, [#allocation3], 128, 128, 8
    $region5: #{tpu_custom_call.1} parent=1 // pred_fallthru
      _
    // Predicated region
    $region6: #{tpu_custom_call.1} parent=1 // pred_check
      _
    $region7: #{tpu_custom_call.1} parent=1 // pred_check_branch
      %27 = sbr.rel (0) target = $region9
    $region8: #{tpu_custom_call.1} parent=1 // pred_region
      %s28 = sadd.s32 0, 0
      %s29 = smul.u32 2, %s28
      %s31 = ssub.s32 256, 256
      %32 = vsyncadd [#allocation6], %s31
      %s33 = smul.addr %s29, 128
      %s34 = scalar_lea.hbm %s1, %s33
      %s35 = sshll.u32 [#allocation5], 4
      %s36 = int_to_ptr.vmem [resolvable:$true] %s35
      %41 = dma.hbm_to_vmem [thread:$0]  %s34, 256, %s36, [#allocation6], 128, 128, 8
    $region9: #{tpu_custom_call.1} parent=1 // pred_fallthru
      _
    // Predicated region
    $region10: #{tpu_custom_call.1} parent=1 // pred_check
      _
    $region11: #{tpu_custom_call.1} parent=1 // pred_check_branch
      %43 = sbr.rel (0) target = $region13
    $region12: #{tpu_custom_call.1} parent=1 // pred_region
      %44 = dma.done [#allocation3], 256
    $region13: #{tpu_custom_call.1} parent=1 // pred_fallthru
      _
    // Predicated region
    $region14: #{tpu_custom_call.1} parent=1 // pred_check
      _
    $region15: #{tpu_custom_call.1} parent=1 // pred_check_branch
      %46 = sbr.rel (0) target = $region17
    $region16: #{tpu_custom_call.1} parent=1 // pred_region
      %47 = dma.done [#allocation6], 256
    $region17: #{tpu_custom_call.1} parent=1 // pred_fallthru
      _
    %s48 = sadd.s32 0, 0
    %s49 = smul.u32 2, %s48
    %s50 = sadd.s32 0, 0
    %s51 = smul.u32 2, %s50
    %p52 = scmp.eq.s32.totalorder 0, 0
    // Predicated region
    $region18: #{tpu_custom_call.1} parent=1 // pred_check
      %p53 = pneg %p52
    $region19: #{tpu_custom_call.1} parent=1 // pred_check_branch
      %55 = sbr.rel (%p53) target = $region21
    $region20: #{tpu_custom_call.1} parent=1 // pred_region
      %56 = vst [vmem:[#allocation7] sm:$0x1] 0.0
      %57 = vst [vmem:[#allocation7 + $0x1] sm:$0x1] 0.0
      %58 = vst [vmem:[#allocation7 + $0x2] sm:$0x1] 0.0
    $region21: #{tpu_custom_call.1} parent=1 // pred_fallthru
      _
    %v59 = vld [vmem:[#allocation2] sm:$0xff]
    %v60 = vld [vmem:[#allocation2 + $0x8] sm:$0xff]
    %v61 = vld [vmem:[#allocation5] sm:$0xff]
    %v62 = vld [vmem:[#allocation5 + $0x8] sm:$0xff]
    %v63 = vld [vmem:[#allocation7] sm:$0x1]
    %v64 = vmul.f32 %v59, %v61
    %v65 = vmul.f32 %v60, %v62
    %v66 = vadd.f32 %v64, %v65
    %v67 = vrot.slane %v66, 4
    %v68 = vadd.f32 %v66, %v67
    %v69 = vrot.slane %v68, 2
    %v70 = vadd.f32 %v68, %v69
    %v71 = vrot.slane %v70, 1
    %v72 = vadd.f32 %v70, %v71
    %v73 = vadd.f32 %v63, %v72
    %74 = vst [vmem:[#allocation7] sm:$0x1] %v73
    %s75 = scalar_lea.vmem [#allocation7], 1
    %v76 = vld [vmem:[%s75] sm:$0x1]
    %v77 = vmul.f32 %v59, %v59
    %v78 = vmul.f32 %v60, %v60
    %v79 = vadd.f32 %v77, %v78
    %v80 = vrot.slane %v79, 4
    %v81 = vadd.f32 %v79, %v80
    %v82 = vrot.slane %v81, 2
    %v83 = vadd.f32 %v81, %v82
    %v84 = vrot.slane %v83, 1
    %v85 = vadd.f32 %v83, %v84
    %v86 = vadd.f32 %v76, %v85
    %87 = vst [vmem:[%s75] sm:$0x1] %v86
    %s88 = scalar_lea.vmem [#allocation7], 2
    %v89 = vld [vmem:[%s88] sm:$0x1]
    %v90 = vadd.f32 %v61, %v62
    %v91 = vrot.slane %v90, 4
    %v92 = vadd.f32 %v90, %v91
    %v93 = vrot.slane %v92, 2
    %v94 = vadd.f32 %v92, %v93
    %v95 = vrot.slane %v94, 1
    %v96 = vadd.f32 %v94, %v95
    %v97 = vadd.f32 %v89, %v96
    %98 = vst [vmem:[%s88] sm:$0x1] %v97
    // Predicated region
    $region22: #{tpu_custom_call.1} parent=1 // pred_check
      _
    $region23: #{tpu_custom_call.1} parent=1 // pred_check_branch
      %100 = sbr.rel (0) target = $region25
    $region24: #{tpu_custom_call.1} parent=1 // pred_region
      %s102 = ssub.s32 48, 48
      %103 = vsyncadd [#allocation4], %s102
      %s104 = sshll.u32 [#allocation7], 4
      %s105 = int_to_ptr.vmem [resolvable:$true] %s104
      %110 = dma.vmem_to_hbm [thread:$0]  %s105, 48, %s2, [#allocation4], 16, 16, 1
    $region25: #{tpu_custom_call.1} parent=1 // pred_fallthru
      _
    // Predicated region
    $region26: #{tpu_custom_call.1} parent=1 // pred_check
      _
    $region27: #{tpu_custom_call.1} parent=1 // pred_check_branch
      %112 = sbr.rel (0) target = $region29
    $region28: #{tpu_custom_call.1} parent=1 // pred_region
      %113 = dma.done [#allocation4], 48
    $region29: #{tpu_custom_call.1} parent=1 // pred_fallthru
      _
    %114 = vsyncpa [#allocation3], 1
    %115 = vsyncpa [#allocation6], 1
    %116 = vsyncpa [#allocation4], 1

</llo_original>
